<compile_context>
chip_gen: v6e
topology: v6e:2x2x1
jax: 0.10.0
libtpu: 0.0.40
codegen_flags: <defaults>
</compile_context>

<pallas_src>
import jax
import jax.numpy as jnp
from jax import lax
from jax.experimental import pallas as pl
from jax.experimental.pallas import tpu as pltpu


def _ddfm_v2_kernel(p_ref, i_ref, d_ref,
                    s1p_ref, b1p_ref, wp_ref, s2p_ref, b2p_ref,
                    s1i_ref, b1i_ref, wi_ref, s2i_ref, b2i_ref,
                    o_ref):
    """One (batch, pixel-tile) per grid step.

    p/i/d_ref : (1, Cin, TM)   input tiles (channels on sublanes, pixels on lanes)
    s1*/b1*   : (Cin, 1)       folded BN1 scale/shift (per branch)
    wp/wi     : (Cout, Cin)    1x1 conv weights, already transposed (PyTorch OIHW -> OI)
    s2*/b2*   : (Cout, 1)      folded BN2 scale/shift (per branch)
    o_ref     : (1, Cout, TM)  output tile
    """
    pv = p_ref[0]                                   # (Cin, TM) f32
    iv = i_ref[0]
    dv = d_ref[0]

    # edge_att = sigmoid(d)   (exp -> EUP, free VLIW slot)
    edge = 1.0 / (1.0 + jnp.exp(-dv))

    # Gated mixes (f32 elementwise on VPU)
    xp = (1.0 - edge) * iv + pv                     # input of conv_p
    xi = iv + edge * pv                             # input of conv_i

    # Folded BN1 + ReLU (per-channel scale/shift broadcast along lanes)
    ap = jnp.maximum(xp * s1p_ref[...] + b1p_ref[...], 0.0)
    ai = jnp.maximum(xi * s1i_ref[...] + b1i_ref[...], 0.0)

    # 1x1 convs as MXU matmuls: (Cout,Cin) @ (Cin,TM) -> (Cout,TM).
    # bf16 operands, f32 accumulation.
    yp = jnp.dot(wp_ref[...].astype(jnp.bfloat16), ap.astype(jnp.bfloat16),
                 preferred_element_type=jnp.float32)
    yi = jnp.dot(wi_ref[...].astype(jnp.bfloat16), ai.astype(jnp.bfloat16),
                 preferred_element_type=jnp.float32)

    # Folded BN2 on each branch, then sum.  Lane-dense store (TM multiple of 128).
    out = (yp * s2p_ref[...] + b2p_ref[...]) + (yi * s2i_ref[...] + b2i_ref[...])
    o_ref[0] = out.astype(o_ref.dtype)


def _pick_tile(hw):
    """Largest pixel tile that keeps the lane axis dense and divides H*W."""
    for tm in (2048, 1024, 512, 256, 128):
        if hw % tm == 0:
            return tm
    return hw  # fall back to the full (unblocked) extent


def ddfm_v2_pallas(p, i, d, params):
    (s1p, b1p, wp, s2p, b2p, s1i, b1i, wi, s2i, b2i) = params
    N, Cin, H, W = p.shape
    Cout = wp.shape[0]
    HW = H * W
    TM = _pick_tile(HW)

    p2 = p.reshape(N, Cin, HW).astype(jnp.float32)
    i2 = i.reshape(N, Cin, HW).astype(jnp.float32)
    d2 = d.reshape(N, Cin, HW).astype(jnp.float32)

    tile_spec = pl.BlockSpec((1, Cin, TM), lambda n, m: (n, 0, m))

    out = pl.pallas_call(
        _ddfm_v2_kernel,
        out_shape=jax.ShapeDtypeStruct((N, Cout, HW), jnp.float32),
        grid=(N, HW // TM),
        in_specs=[
            tile_spec,                                           # p
            tile_spec,                                           # i
            tile_spec,                                           # d
            pl.BlockSpec((Cin, 1), lambda n, m: (0, 0)),         # s1p
            pl.BlockSpec((Cin, 1), lambda n, m: (0, 0)),         # b1p
            pl.BlockSpec((Cout, Cin), lambda n, m: (0, 0)),      # wp
            pl.BlockSpec((Cout, 1), lambda n, m: (0, 0)),        # s2p
            pl.BlockSpec((Cout, 1), lambda n, m: (0, 0)),        # b2p
            pl.BlockSpec((Cin, 1), lambda n, m: (0, 0)),         # s1i
            pl.BlockSpec((Cin, 1), lambda n, m: (0, 0)),         # b1i
            pl.BlockSpec((Cout, Cin), lambda n, m: (0, 0)),      # wi
            pl.BlockSpec((Cout, 1), lambda n, m: (0, 0)),        # s2i
            pl.BlockSpec((Cout, 1), lambda n, m: (0, 0)),        # b2i
        ],
        out_specs=pl.BlockSpec((1, Cout, TM), lambda n, m: (n, 0, m)),
        compiler_params=pltpu.CompilerParams(
            dimension_semantics=("parallel", "parallel")),
    )(p2, i2, d2, s1p, b1p, wp, s2p, b2p, s1i, b1i, wi, s2i, b2i)

    return out.reshape(N, Cout, H, W)


def ddfm_v2_ref(p, i, d, params):
    """Plain-JAX reference (same math) for verification."""
    (s1p, b1p, wp, s2p, b2p, s1i, b1i, wi, s2i, b2i) = params
    p = p.astype(jnp.float32)
    i = i.astype(jnp.float32)
    d = d.astype(jnp.float32)
    edge = jax.nn.sigmoid(d)
    xp = (1.0 - edge) * i + p
    xi = i + edge * p

    def branch(x, s1, b1, w, s2, b2):
        a = jnp.maximum(x * s1.reshape(1, -1, 1, 1) + b1.reshape(1, -1, 1, 1), 0.0)
        y = jnp.einsum('oc,nchw->nohw', w, a, precision=lax.Precision.HIGHEST)
        return y * s2.reshape(1, -1, 1, 1) + b2.reshape(1, -1, 1, 1)

    return (branch(xp, s1p, b1p, wp, s2p, b2p)
            + branch(xi, s1i, b1i, wi, s2i, b2i))


def _fold_bn(key, c, eps=1e-5):
    ks = jax.random.split(key, 4)
    gamma = 1.0 + 0.1 * jax.random.normal(ks[0], (c,), jnp.float32)
    beta = 0.1 * jax.random.normal(ks[1], (c,), jnp.float32)
    rmean = 0.1 * jax.random.normal(ks[2], (c,), jnp.float32)
    rvar = jax.random.uniform(ks[3], (c,), jnp.float32, 0.5, 1.5)
    scale = gamma / jnp.sqrt(rvar + eps)
    shift = beta - rmean * scale
    return scale.reshape(c, 1), shift.reshape(c, 1)


def init_params(key, in_channels, out_channels):
    kp1, kp2, kpw, ki1, ki2, kiw = jax.random.split(key, 6)
    # conv_p branch
    s1p, b1p = _fold_bn(kp1, in_channels)
    wp = 0.1 * jax.random.normal(kpw, (out_channels, in_channels), jnp.float32)
    s2p, b2p = _fold_bn(kp2, out_channels)
    # conv_i branch
    s1i, b1i = _fold_bn(ki1, in_channels)
    wi = 0.1 * jax.random.normal(kiw, (out_channels, in_channels), jnp.float32)
    s2i, b2i = _fold_bn(ki2, out_channels)
    return (s1p, b1p, wp, s2p, b2p, s1i, b1i, wi, s2i, b2i)


if __name__ == "__main__":
    key = jax.random.PRNGKey(0)
    kp, ki, kd, kparams = jax.random.split(key, 4)

    # Small shapes: in_channels=4, out_channels=8, 16x16 spatial, batch=2.
    N, Cin, H, W = 2, 4, 16, 16
    Cout = 8

    p = jax.random.normal(kp, (N, Cin, H, W), dtype=jnp.float32)
    i = jax.random.normal(ki, (N, Cin, H, W), dtype=jnp.float32)
    d = jax.random.normal(kd, (N, Cin, H, W), dtype=jnp.float32)
    params = init_params(kparams, Cin, Cout)

    out = ddfm_v2_pallas(p, i, d, params)
    out = jax.block_until_ready(out)

    ref = ddfm_v2_ref(p, i, d, params)
    assert out.shape == (N, Cout, H, W), out.shape
    err = float(jnp.max(jnp.abs(out - ref)))
    assert err < 2e-2, f"max abs err = {err}"

    print("KERNEL_OK")
</pallas_src>

<mosaic_0001>
module attributes {stable_mosaic.version = 11 : i64} {
  func.func @_ddfm_v2_kernel(%arg0: i32, %arg1: i32, %arg2: memref<1x4x256xf32, #tpu.memory_space<vmem>>, %arg3: memref<1x4x256xf32, #tpu.memory_space<vmem>>, %arg4: memref<1x4x256xf32, #tpu.memory_space<vmem>>, %arg5: memref<4x1xf32, #tpu.memory_space<vmem>>, %arg6: memref<4x1xf32, #tpu.memory_space<vmem>>, %arg7: memref<8x4xf32, #tpu.memory_space<vmem>>, %arg8: memref<8x1xf32, #tpu.memory_space<vmem>>, %arg9: memref<8x1xf32, #tpu.memory_space<vmem>>, %arg10: memref<4x1xf32, #tpu.memory_space<vmem>>, %arg11: memref<4x1xf32, #tpu.memory_space<vmem>>, %arg12: memref<8x4xf32, #tpu.memory_space<vmem>>, %arg13: memref<8x1xf32, #tpu.memory_space<vmem>>, %arg14: memref<8x1xf32, #tpu.memory_space<vmem>>, %arg15: memref<1x8x256xf32, #tpu.memory_space<vmem>>) attributes {dimension_semantics = [#tpu.dimension_semantics<parallel>, #tpu.dimension_semantics<parallel>], iteration_bounds = array<i64: 2, 1>, scalar_prefetch = 0 : i64, scratch_operands = 0 : i64, tpu.core_type = #tpu.core_type<tc>, window_params = [{transform_indices = @transform_0, window_bounds = array<i64: 1, 4, 256>}, {transform_indices = @transform_1, window_bounds = array<i64: 1, 4, 256>}, {transform_indices = @transform_2, window_bounds = array<i64: 1, 4, 256>}, {pipeline_mode = #tpu.pipeline_mode<synchronous>, transform_indices = @transform_3, window_bounds = array<i64: 4, 1>}, {pipeline_mode = #tpu.pipeline_mode<synchronous>, transform_indices = @transform_4, window_bounds = array<i64: 4, 1>}, {pipeline_mode = #tpu.pipeline_mode<synchronous>, transform_indices = @transform_5, window_bounds = array<i64: 8, 4>}, {pipeline_mode = #tpu.pipeline_mode<synchronous>, transform_indices = @transform_6, window_bounds = array<i64: 8, 1>}, {pipeline_mode = #tpu.pipeline_mode<synchronous>, transform_indices = @transform_7, window_bounds = array<i64: 8, 1>}, {pipeline_mode = #tpu.pipeline_mode<synchronous>, transform_indices = @transform_8, window_bounds = array<i64: 4, 1>}, {pipeline_mode = #tpu.pipeline_mode<synchronous>, transform_indices = @transform_9, window_bounds = array<i64: 4, 1>}, {pipeline_mode = #tpu.pipeline_mode<synchronous>, transform_indices = @transform_10, window_bounds = array<i64: 8, 4>}, {pipeline_mode = #tpu.pipeline_mode<synchronous>, transform_indices = @transform_11, window_bounds = array<i64: 8, 1>}, {pipeline_mode = #tpu.pipeline_mode<synchronous>, transform_indices = @transform_12, window_bounds = array<i64: 8, 1>}, {transform_indices = @transform_13, window_bounds = array<i64: 1, 8, 256>}]} {
    %c0 = arith.constant 0 : index
    %c0_0 = arith.constant 0 : index
    %c0_1 = arith.constant 0 : index
    %0 = vector.load %arg2[%c0, %c0_0, %c0_1] : memref<1x4x256xf32, #tpu.memory_space<vmem>>, vector<1x4x256xf32>
    %1 = vector.shape_cast %0 : vector<1x4x256xf32> to vector<4x256xf32>
    %c0_2 = arith.constant 0 : index
    %c0_3 = arith.constant 0 : index
    %c0_4 = arith.constant 0 : index
    %2 = vector.load %arg3[%c0_2, %c0_3, %c0_4] : memref<1x4x256xf32, #tpu.memory_space<vmem>>, vector<1x4x256xf32>
    %3 = vector.shape_cast %2 : vector<1x4x256xf32> to vector<4x256xf32>
    %c0_5 = arith.constant 0 : index
    %c0_6 = arith.constant 0 : index
    %c0_7 = arith.constant 0 : index
    %4 = vector.load %arg4[%c0_5, %c0_6, %c0_7] : memref<1x4x256xf32, #tpu.memory_space<vmem>>, vector<1x4x256xf32>
    %5 = vector.shape_cast %4 : vector<1x4x256xf32> to vector<4x256xf32>
    %cst = arith.constant 0.000000e+00 : f32
    %6 = vector.broadcast %cst : f32 to vector<4x256xf32>
    %7 = arith.subf %6, %5 : vector<4x256xf32>
    %8 = math.exp %7 : vector<4x256xf32>
    %cst_8 = arith.constant 1.000000e+00 : f32
    %9 = vector.broadcast %cst_8 : f32 to vector<4x256xf32>
    %10 = arith.addf %9, %8 : vector<4x256xf32>
    %cst_9 = arith.constant 1.000000e+00 : f32
    %11 = vector.broadcast %cst_9 : f32 to vector<4x256xf32>
    %12 = arith.divf %11, %10 : vector<4x256xf32>
    %cst_10 = arith.constant 1.000000e+00 : f32
    %13 = vector.broadcast %cst_10 : f32 to vector<4x256xf32>
    %14 = arith.subf %13, %12 : vector<4x256xf32>
    %15 = arith.mulf %14, %3 : vector<4x256xf32>
    %16 = arith.addf %15, %1 : vector<4x256xf32>
    %17 = arith.mulf %12, %1 : vector<4x256xf32>
    %18 = arith.addf %3, %17 : vector<4x256xf32>
    %c0_11 = arith.constant 0 : index
    %c0_12 = arith.constant 0 : index
    %19 = vector.load %arg5[%c0_11, %c0_12] : memref<4x1xf32, #tpu.memory_space<vmem>>, vector<4x1xf32>
    %20 = vector.broadcast %19 : vector<4x1xf32> to vector<4x256xf32>
    %21 = arith.mulf %16, %20 : vector<4x256xf32>
    %c0_13 = arith.constant 0 : index
    %c0_14 = arith.constant 0 : index
    %22 = vector.load %arg6[%c0_13, %c0_14] : memref<4x1xf32, #tpu.memory_space<vmem>>, vector<4x1xf32>
    %23 = vector.broadcast %22 : vector<4x1xf32> to vector<4x256xf32>
    %24 = arith.addf %21, %23 : vector<4x256xf32>
    %cst_15 = arith.constant 0.000000e+00 : f32
    %25 = vector.broadcast %cst_15 : f32 to vector<4x256xf32>
    %26 = arith.maximumf %24, %25 : vector<4x256xf32>
    %c0_16 = arith.constant 0 : index
    %c0_17 = arith.constant 0 : index
    %27 = vector.load %arg10[%c0_16, %c0_17] : memref<4x1xf32, #tpu.memory_space<vmem>>, vector<4x1xf32>
    %28 = vector.broadcast %27 : vector<4x1xf32> to vector<4x256xf32>
    %29 = arith.mulf %18, %28 : vector<4x256xf32>
    %c0_18 = arith.constant 0 : index
    %c0_19 = arith.constant 0 : index
    %30 = vector.load %arg11[%c0_18, %c0_19] : memref<4x1xf32, #tpu.memory_space<vmem>>, vector<4x1xf32>
    %31 = vector.broadcast %30 : vector<4x1xf32> to vector<4x256xf32>
    %32 = arith.addf %29, %31 : vector<4x256xf32>
    %cst_20 = arith.constant 0.000000e+00 : f32
    %33 = vector.broadcast %cst_20 : f32 to vector<4x256xf32>
    %34 = arith.maximumf %32, %33 : vector<4x256xf32>
    %c0_21 = arith.constant 0 : index
    %c0_22 = arith.constant 0 : index
    %35 = vector.load %arg7[%c0_21, %c0_22] : memref<8x4xf32, #tpu.memory_space<vmem>>, vector<8x4xf32>
    %36 = arith.truncf %35 : vector<8x4xf32> to vector<8x4xbf16>
    %37 = arith.truncf %26 : vector<4x256xf32> to vector<4x256xbf16>
    %cst_23 = arith.constant dense<0.000000e+00> : vector<8x256xf32>
    %38 = tpu.matmul %36, %37, %cst_23 {dimension_numbers = #tpu.dot_dimension_numbers<[1], [0], [0], [1], [0, 0, 1, 1], [], []>} : vector<8x4xbf16>, vector<4x256xbf16>, vector<8x256xf32> -> vector<8x256xf32>
    %c0_24 = arith.constant 0 : index
    %c0_25 = arith.constant 0 : index
    %39 = vector.load %arg12[%c0_24, %c0_25] : memref<8x4xf32, #tpu.memory_space<vmem>>, vector<8x4xf32>
    %40 = arith.truncf %39 : vector<8x4xf32> to vector<8x4xbf16>
    %41 = arith.truncf %34 : vector<4x256xf32> to vector<4x256xbf16>
    %cst_26 = arith.constant dense<0.000000e+00> : vector<8x256xf32>
    %42 = tpu.matmul %40, %41, %cst_26 {dimension_numbers = #tpu.dot_dimension_numbers<[1], [0], [0], [1], [0, 0, 1, 1], [], []>} : vector<8x4xbf16>, vector<4x256xbf16>, vector<8x256xf32> -> vector<8x256xf32>
    %c0_27 = arith.constant 0 : index
    %c0_28 = arith.constant 0 : index
    %43 = vector.load %arg8[%c0_27, %c0_28] : memref<8x1xf32, #tpu.memory_space<vmem>>, vector<8x1xf32>
    %44 = vector.broadcast %43 : vector<8x1xf32> to vector<8x256xf32>
    %45 = arith.mulf %38, %44 : vector<8x256xf32>
    %c0_29 = arith.constant 0 : index
    %c0_30 = arith.constant 0 : index
    %46 = vector.load %arg9[%c0_29, %c0_30] : memref<8x1xf32, #tpu.memory_space<vmem>>, vector<8x1xf32>
    %47 = vector.broadcast %46 : vector<8x1xf32> to vector<8x256xf32>
    %48 = arith.addf %45, %47 : vector<8x256xf32>
    %c0_31 = arith.constant 0 : index
    %c0_32 = arith.constant 0 : index
    %49 = vector.load %arg13[%c0_31, %c0_32] : memref<8x1xf32, #tpu.memory_space<vmem>>, vector<8x1xf32>
    %50 = vector.broadcast %49 : vector<8x1xf32> to vector<8x256xf32>
    %51 = arith.mulf %42, %50 : vector<8x256xf32>
    %c0_33 = arith.constant 0 : index
    %c0_34 = arith.constant 0 : index
    %52 = vector.load %arg14[%c0_33, %c0_34] : memref<8x1xf32, #tpu.memory_space<vmem>>, vector<8x1xf32>
    %53 = vector.broadcast %52 : vector<8x1xf32> to vector<8x256xf32>
    %54 = arith.addf %51, %53 : vector<8x256xf32>
    %55 = arith.addf %48, %54 : vector<8x256xf32>
    %c0_35 = arith.constant 0 : index
    %c0_36 = arith.constant 0 : index
    %c0_37 = arith.constant 0 : index
    %56 = vector.load %arg15[%c0_35, %c0_36, %c0_37] : memref<1x8x256xf32, #tpu.memory_space<vmem>>, vector<1x8x256xf32>
    %57 = vector.shape_cast %56 : vector<1x8x256xf32> to vector<8x256xf32>
    %58 = vector.shape_cast %55 : vector<8x256xf32> to vector<1x8x256xf32>
    tpu.vector_store %arg15[%c0_35, %c0_36, %c0_37], %58 {strides = array<i32>} : memref<1x8x256xf32, #tpu.memory_space<vmem>>, vector<1x8x256xf32>,
    return
  }
  func.func @transform_0(%arg0: i32, %arg1: i32) -> (i32, i32, i32) {
    %c0_i32 = arith.constant 0 : i32
    %c0_i32_0 = arith.constant 0 : i32
    return %arg0, %c0_i32, %arg1 : i32, i32, i32
  }
  func.func @transform_1(%arg0: i32, %arg1: i32) -> (i32, i32, i32) {
    %c0_i32 = arith.constant 0 : i32
    %c0_i32_0 = arith.constant 0 : i32
    return %arg0, %c0_i32, %arg1 : i32, i32, i32
  }
  func.func @transform_2(%arg0: i32, %arg1: i32) -> (i32, i32, i32) {
    %c0_i32 = arith.constant 0 : i32
    %c0_i32_0 = arith.constant 0 : i32
    return %arg0, %c0_i32, %arg1 : i32, i32, i32
  }
  func.func @transform_3(%arg0: i32, %arg1: i32) -> (i32, i32) {
    %c0_i32 = arith.constant 0 : i32
    %c0_i32_0 = arith.constant 0 : i32
    %c0_i32_1 = arith.constant 0 : i32
    return %c0_i32, %c0_i32_0 : i32, i32
  }
  func.func @transform_4(%arg0: i32, %arg1: i32) -> (i32, i32) {
    %c0_i32 = arith.constant 0 : i32
    %c0_i32_0 = arith.constant 0 : i32
    %c0_i32_1 = arith.constant 0 : i32
    return %c0_i32, %c0_i32_0 : i32, i32
  }
  func.func @transform_5(%arg0: i32, %arg1: i32) -> (i32, i32) {
    %c0_i32 = arith.constant 0 : i32
    %c0_i32_0 = arith.constant 0 : i32
    %c0_i32_1 = arith.constant 0 : i32
    return %c0_i32, %c0_i32_0 : i32, i32
  }
  func.func @transform_6(%arg0: i32, %arg1: i32) -> (i32, i32) {
    %c0_i32 = arith.constant 0 : i32
    %c0_i32_0 = arith.constant 0 : i32
    %c0_i32_1 = arith.constant 0 : i32
    return %c0_i32, %c0_i32_0 : i32, i32
  }
  func.func @transform_7(%arg0: i32, %arg1: i32) -> (i32, i32) {
    %c0_i32 = arith.constant 0 : i32
    %c0_i32_0 = arith.constant 0 : i32
    %c0_i32_1 = arith.constant 0 : i32
    return %c0_i32, %c0_i32_0 : i32, i32
  }
  func.func @transform_8(%arg0: i32, %arg1: i32) -> (i32, i32) {
    %c0_i32 = arith.constant 0 : i32
    %c0_i32_0 = arith.constant 0 : i32
    %c0_i32_1 = arith.constant 0 : i32
    return %c0_i32, %c0_i32_0 : i32, i32
  }
  func.func @transform_9(%arg0: i32, %arg1: i32) -> (i32, i32) {
    %c0_i32 = arith.constant 0 : i32
    %c0_i32_0 = arith.constant 0 : i32
    %c0_i32_1 = arith.constant 0 : i32
    return %c0_i32, %c0_i32_0 : i32, i32
  }
  func.func @transform_10(%arg0: i32, %arg1: i32) -> (i32, i32) {
    %c0_i32 = arith.constant 0 : i32
    %c0_i32_0 = arith.constant 0 : i32
    %c0_i32_1 = arith.constant 0 : i32
    return %c0_i32, %c0_i32_0 : i32, i32
  }
  func.func @transform_11(%arg0: i32, %arg1: i32) -> (i32, i32) {
    %c0_i32 = arith.constant 0 : i32
    %c0_i32_0 = arith.constant 0 : i32
    %c0_i32_1 = arith.constant 0 : i32
    return %c0_i32, %c0_i32_0 : i32, i32
  }
  func.func @transform_12(%arg0: i32, %arg1: i32) -> (i32, i32) {
    %c0_i32 = arith.constant 0 : i32
    %c0_i32_0 = arith.constant 0 : i32
    %c0_i32_1 = arith.constant 0 : i32
    return %c0_i32, %c0_i32_0 : i32, i32
  }
  func.func @transform_13(%arg0: i32, %arg1: i32) -> (i32, i32, i32) {
    %c0_i32 = arith.constant 0 : i32
    %c0_i32_0 = arith.constant 0 : i32
    return %arg0, %c0_i32, %arg1 : i32, i32, i32
  }
}

</mosaic_0001>

<llo_original>
// kernel: tpu_custom_call.1
$region0: #{tpu_custom_call.1}
  #allocation0 [shape = 'u32[]', space=smem, size = 0x4, offset = 0x4, fixed_abs, tag = 'smem constant byte address 0x4 - core index']
  #allocation1 [shape = 'u32[144,128]{1,0:T(1,128)}', space=vmem, size = 0x12000, scoped, tag = 'internal scratch']
  %s0 = inlined_call_operand.vmem [shape: f32[2,4,256], index: 0, kind: input, shape index: {}]
  %s1 = inlined_call_operand.vmem [shape: f32[2,4,256], index: 1, kind: input, shape index: {}]
  %s2 = inlined_call_operand.vmem [shape: f32[2,4,256], index: 2, kind: input, shape index: {}]
  %s3 = inlined_call_operand.vmem [shape: f32[4,1], index: 3, kind: input, shape index: {}]
  %s4 = inlined_call_operand.vmem [shape: f32[4,1], index: 4, kind: input, shape index: {}]
  %s5 = inlined_call_operand.vmem [shape: f32[8,4], index: 5, kind: input, shape index: {}]
  %s6 = inlined_call_operand.vmem [shape: f32[8,1], index: 6, kind: input, shape index: {}]
  %s7 = inlined_call_operand.vmem [shape: f32[8,1], index: 7, kind: input, shape index: {}]
  %s8 = inlined_call_operand.vmem [shape: f32[4,1], index: 8, kind: input, shape index: {}]
  %s9 = inlined_call_operand.vmem [shape: f32[4,1], index: 9, kind: input, shape index: {}]
  %s10 = inlined_call_operand.vmem [shape: f32[8,4], index: 10, kind: input, shape index: {}]
  %s11 = inlined_call_operand.vmem [shape: f32[8,1], index: 11, kind: input, shape index: {}]
  %s12 = inlined_call_operand.vmem [shape: f32[8,1], index: 12, kind: input, shape index: {}]
  %s13 = inlined_call_operand.hbm [shape: f32[2,8,256], index: 13, kind: output, shape index: {}]
  %s14 = sld [smem:[#allocation0]]
  $region85: #{tpu_custom_call.1} parent=0
    _
  %s16 = ssub.s32 1, %s14
  %s17 = scalar_select 0, %s16, %s14
  $region1: #{tpu_custom_call.1} parent=0
    #allocation2 [shape = 'u8[16384]{0}', space=vmem, size = 0x4000, scoped, tag = 'output window, operand 0']
    #allocation3 [shape = 's32[2]{0}', space=sflag, size = 0x8, scoped, tag = 'scoped memory for tpu_custom_call.1']
    %18 = vsyncpa [#allocation3], 0
    %s19 = scalar_lea.sflag [#allocation3], 1
    %20 = vsyncpa %s19, 0
    loop: start=0, step=1, limit=4
    $region2: #{tpu_custom_call.1} parent=1 // loop_pre_header
      _
    $region3: #{tpu_custom_call.1} parent=1 // loop_header
      %s22 = sphi 0, %s26
      %p23 = scmp.ge.s32.totalorder %s22, 4
      %s29 = sphi 0, %s41
      %s30 = sphi 0, %s37
      %s31 = sphi 0, %s29
      %s32 = sphi 0, %s30
      %s33 = sphi 0, %s31
      %s34 = sphi 0, %s32
      %s46 = sphi 0, %s48
      %s49 = sphi 0, %s46
      %s50 = sphi 0, %s49
      %s66 = sphi 0, %s50
      %s74 = sphi 0, %s76
      %s77 = sphi 0, %s74
      %s78 = sphi 0, %s77
      %s94 = sphi 0, %s78
      %s102 = sphi 0, %s104
      %s105 = sphi 0, %s102
      %s106 = sphi 0, %s105
      %s122 = sphi 0, %s106
      %s126 = sphi 0, %s126
      %s128 = sphi 0, %s126
      %s129 = sphi 0, %s128
      %s143 = sphi 0, %s129
      %s147 = sphi 0, %s147
      %s149 = sphi 0, %s147
      %s150 = sphi 0, %s149
      %s164 = sphi 0, %s150
      %s168 = sphi 0, %s168
      %s170 = sphi 0, %s168
      %s171 = sphi 0, %s170
      %s185 = sphi 0, %s171
      %s189 = sphi 0, %s189
      %s191 = sphi 0, %s189
      %s192 = sphi 0, %s191
      %s206 = sphi 0, %s192
      %s210 = sphi 0, %s210
      %s212 = sphi 0, %s210
      %s213 = sphi 0, %s212
      %s227 = sphi 0, %s213
      %s231 = sphi 0, %s231
      %s233 = sphi 0, %s231
      %s234 = sphi 0, %s233
      %s248 = sphi 0, %s234
      %s252 = sphi 0, %s252
      %s254 = sphi 0, %s252
      %s255 = sphi 0, %s254
      %s269 = sphi 0, %s255
      %s273 = sphi 0, %s273
      %s275 = sphi 0, %s273
      %s276 = sphi 0, %s275
      %s290 = sphi 0, %s276
      %s294 = sphi 0, %s294
      %s296 = sphi 0, %s294
      %s297 = sphi 0, %s296
      %s311 = sphi 0, %s297
      %s315 = sphi 0, %s315
      %s317 = sphi 0, %s315
      %s318 = sphi 0, %s317
      %s332 = sphi 0, %s318
      %s340 = sphi 0, %s342
      %s343 = sphi 0, %s340
      %s344 = sphi 0, %s343
      %s360 = sphi 0, %s344
    $region4: #{tpu_custom_call.1} parent=1 // loop_header_branch
      %25 = sbr.rel (%p23) target = $region8
    $region5: #{tpu_custom_call.1} parent=1 // loop_body
      %s27 = ssub.s32 %s22, 1
      %s28 = ssub.s32 %s22, 2
      %s35 = sadd.s32 1, %s30
      %p36 = scmp.ge.s32.totalorder %s35, 1
      %s37 = scalar_select %p36, 0, %s35
      %s38 = sadd.s32 1, %s29
      %s39 = scalar_select %p36, %s38, %s29
      %p40 = scmp.ge.s32.totalorder %s39, 2
      %s41 = scalar_select %p40, 0, %s39
      %s42 = ssub.s32 %s29, %s41
      %s43 = ssub.s32 %s30, %s37
      %s44 = sor.u32 %s42, %s43
      %p45 = scmp.eq.s32.totalorder %s44, 0
      %s47 = sadd.s32 %s46, 1
      %s48 = scalar_select %p45, %s46, %s47
      %p51 = pneg %p45
      %p52 = scmp.eq.s32.totalorder %s22, 1
      %p53 = por %p51, %p52
      %p54 = scmp.ne.s32.totalorder %s46, %s49
      %p55 = scmp.eq.s32.totalorder %s22, 0
      %p56 = por %p54, %p55
      %p57 = scmp.ne.s32.totalorder %s46, %s49
      %p58 = scmp.eq.s32.totalorder %s27, 1
      %p59 = por %p57, %p58
      %p60 = scmp.ne.s32.totalorder %s49, %s50
      %p61 = scmp.eq.s32.totalorder %s27, 0
      %p62 = por %p60, %p61
      %p63 = scmp.ne.s32.totalorder %s49, %s50
      %p64 = scmp.eq.s32.totalorder %s28, 1
      %p65 = por %p63, %p64
      %p67 = scmp.ne.s32.totalorder %s50, %s66
      %p68 = scmp.eq.s32.totalorder %s28, 0
      %p69 = por %p67, %p68
      %s70 = ssub.s32 %s29, %s41
      %s71 = ssub.s32 %s30, %s37
      %s72 = sor.u32 %s70, %s71
      %p73 = scmp.eq.s32.totalorder %s72, 0
      %s75 = sadd.s32 %s74, 1
      %s76 = scalar_select %p73, %s74, %s75
      %p79 = pneg %p73
      %p80 = scmp.eq.s32.totalorder %s22, 1
      %p81 = por %p79, %p80
      %p82 = scmp.ne.s32.totalorder %s74, %s77
      %p83 = scmp.eq.s32.totalorder %s22, 0
      %p84 = por %p82, %p83
      %p85 = scmp.ne.s32.totalorder %s74, %s77
      %p86 = scmp.eq.s32.totalorder %s27, 1
      %p87 = por %p85, %p86
      %p88 = scmp.ne.s32.totalorder %s77, %s78
      %p89 = scmp.eq.s32.totalorder %s27, 0
      %p90 = por %p88, %p89
      %p91 = scmp.ne.s32.totalorder %s77, %s78
      %p92 = scmp.eq.s32.totalorder %s28, 1
      %p93 = por %p91, %p92
      %p95 = scmp.ne.s32.totalorder %s78, %s94
      %p96 = scmp.eq.s32.totalorder %s28, 0
      %p97 = por %p95, %p96
      %s98 = ssub.s32 %s29, %s41
      %s99 = ssub.s32 %s30, %s37
      %s100 = sor.u32 %s98, %s99
      %p101 = scmp.eq.s32.totalorder %s100, 0
      %s103 = sadd.s32 %s102, 1
      %s104 = scalar_select %p101, %s102, %s103
      %p107 = pneg %p101
      %p108 = scmp.eq.s32.totalorder %s22, 1
      %p109 = por %p107, %p108
      %p110 = scmp.ne.s32.totalorder %s102, %s105
      %p111 = scmp.eq.s32.totalorder %s22, 0
      %p112 = por %p110, %p111
      %p113 = scmp.ne.s32.totalorder %s102, %s105
      %p114 = scmp.eq.s32.totalorder %s27, 1
      %p115 = por %p113, %p114
      %p116 = scmp.ne.s32.totalorder %s105, %s106
      %p117 = scmp.eq.s32.totalorder %s27, 0
      %p118 = por %p116, %p117
      %p119 = scmp.ne.s32.totalorder %s105, %s106
      %p120 = scmp.eq.s32.totalorder %s28, 1
      %p121 = por %p119, %p120
      %p123 = scmp.ne.s32.totalorder %s106, %s122
      %p124 = scmp.eq.s32.totalorder %s28, 0
      %p125 = por %p123, %p124
      %s127 = sadd.s32 %s126, 1
      %p130 = scmp.eq.s32.totalorder %s22, 1
      %p131 = scmp.ne.s32.totalorder %s126, %s128
      %p132 = scmp.eq.s32.totalorder %s22, 0
      %p133 = por %p131, %p132
      %p134 = scmp.ne.s32.totalorder %s126, %s128
      %p135 = scmp.eq.s32.totalorder %s27, 1
      %p136 = por %p134, %p135
      %p137 = scmp.ne.s32.totalorder %s128, %s129
      %p138 = scmp.eq.s32.totalorder %s27, 0
      %p139 = por %p137, %p138
      %p140 = scmp.ne.s32.totalorder %s128, %s129
      %p141 = scmp.eq.s32.totalorder %s28, 1
      %p142 = por %p140, %p141
      %p144 = scmp.ne.s32.totalorder %s129, %s143
      %p145 = scmp.eq.s32.totalorder %s28, 0
      %p146 = por %p144, %p145
      %s148 = sadd.s32 %s147, 1
      %p151 = scmp.eq.s32.totalorder %s22, 1
      %p152 = scmp.ne.s32.totalorder %s147, %s149
      %p153 = scmp.eq.s32.totalorder %s22, 0
      %p154 = por %p152, %p153
      %p155 = scmp.ne.s32.totalorder %s147, %s149
      %p156 = scmp.eq.s32.totalorder %s27, 1
      %p157 = por %p155, %p156
      %p158 = scmp.ne.s32.totalorder %s149, %s150
      %p159 = scmp.eq.s32.totalorder %s27, 0
      %p160 = por %p158, %p159
      %p161 = scmp.ne.s32.totalorder %s149, %s150
      %p162 = scmp.eq.s32.totalorder %s28, 1
      %p163 = por %p161, %p162
      %p165 = scmp.ne.s32.totalorder %s150, %s164
      %p166 = scmp.eq.s32.totalorder %s28, 0
      %p167 = por %p165, %p166
      %s169 = sadd.s32 %s168, 1
      %p172 = scmp.eq.s32.totalorder %s22, 1
      %p173 = scmp.ne.s32.totalorder %s168, %s170
      %p174 = scmp.eq.s32.totalorder %s22, 0
      %p175 = por %p173, %p174
      %p176 = scmp.ne.s32.totalorder %s168, %s170
      %p177 = scmp.eq.s32.totalorder %s27, 1
      %p178 = por %p176, %p177
      %p179 = scmp.ne.s32.totalorder %s170, %s171
      %p180 = scmp.eq.s32.totalorder %s27, 0
      %p181 = por %p179, %p180
      %p182 = scmp.ne.s32.totalorder %s170, %s171
      %p183 = scmp.eq.s32.totalorder %s28, 1
      %p184 = por %p182, %p183
      %p186 = scmp.ne.s32.totalorder %s171, %s185
      %p187 = scmp.eq.s32.totalorder %s28, 0
      %p188 = por %p186, %p187
      %s190 = sadd.s32 %s189, 1
      %p193 = scmp.eq.s32.totalorder %s22, 1
      %p194 = scmp.ne.s32.totalorder %s189, %s191
      %p195 = scmp.eq.s32.totalorder %s22, 0
      %p196 = por %p194, %p195
      %p197 = scmp.ne.s32.totalorder %s189, %s191
      %p198 = scmp.eq.s32.totalorder %s27, 1
      %p199 = por %p197, %p198
      %p200 = scmp.ne.s32.totalorder %s191, %s192
      %p201 = scmp.eq.s32.totalorder %s27, 0
      %p202 = por %p200, %p201
      %p203 = scmp.ne.s32.totalorder %s191, %s192
      %p204 = scmp.eq.s32.totalorder %s28, 1
      %p205 = por %p203, %p204
      %p207 = scmp.ne.s32.totalorder %s192, %s206
      %p208 = scmp.eq.s32.totalorder %s28, 0
      %p209 = por %p207, %p208
      %s211 = sadd.s32 %s210, 1
      %p214 = scmp.eq.s32.totalorder %s22, 1
      %p215 = scmp.ne.s32.totalorder %s210, %s212
      %p216 = scmp.eq.s32.totalorder %s22, 0
      %p217 = por %p215, %p216
      %p218 = scmp.ne.s32.totalorder %s210, %s212
      %p219 = scmp.eq.s32.totalorder %s27, 1
      %p220 = por %p218, %p219
      %p221 = scmp.ne.s32.totalorder %s212, %s213
      %p222 = scmp.eq.s32.totalorder %s27, 0
      %p223 = por %p221, %p222
      %p224 = scmp.ne.s32.totalorder %s212, %s213
      %p225 = scmp.eq.s32.totalorder %s28, 1
      %p226 = por %p224, %p225
      %p228 = scmp.ne.s32.totalorder %s213, %s227
      %p229 = scmp.eq.s32.totalorder %s28, 0
      %p230 = por %p228, %p229
      %s232 = sadd.s32 %s231, 1
      %p235 = scmp.eq.s32.totalorder %s22, 1
      %p236 = scmp.ne.s32.totalorder %s231, %s233
      %p237 = scmp.eq.s32.totalorder %s22, 0
      %p238 = por %p236, %p237
      %p239 = scmp.ne.s32.totalorder %s231, %s233
      %p240 = scmp.eq.s32.totalorder %s27, 1
      %p241 = por %p239, %p240
      %p242 = scmp.ne.s32.totalorder %s233, %s234
      %p243 = scmp.eq.s32.totalorder %s27, 0
      %p244 = por %p242, %p243
      %p245 = scmp.ne.s32.totalorder %s233, %s234
      %p246 = scmp.eq.s32.totalorder %s28, 1
      %p247 = por %p245, %p246
      %p249 = scmp.ne.s32.totalorder %s234, %s248
      %p250 = scmp.eq.s32.totalorder %s28, 0
      %p251 = por %p249, %p250
      %s253 = sadd.s32 %s252, 1
      %p256 = scmp.eq.s32.totalorder %s22, 1
      %p257 = scmp.ne.s32.totalorder %s252, %s254
      %p258 = scmp.eq.s32.totalorder %s22, 0
      %p259 = por %p257, %p258
      %p260 = scmp.ne.s32.totalorder %s252, %s254
      %p261 = scmp.eq.s32.totalorder %s27, 1
      %p262 = por %p260, %p261
      %p263 = scmp.ne.s32.totalorder %s254, %s255
      %p264 = scmp.eq.s32.totalorder %s27, 0
      %p265 = por %p263, %p264
      %p266 = scmp.ne.s32.totalorder %s254, %s255
      %p267 = scmp.eq.s32.totalorder %s28, 1
      %p268 = por %p266, %p267
      %p270 = scmp.ne.s32.totalorder %s255, %s269
      %p271 = scmp.eq.s32.totalorder %s28, 0
      %p272 = por %p270, %p271
      %s274 = sadd.s32 %s273, 1
      %p277 = scmp.eq.s32.totalorder %s22, 1
      %p278 = scmp.ne.s32.totalorder %s273, %s275
      %p279 = scmp.eq.s32.totalorder %s22, 0
      %p280 = por %p278, %p279
      %p281 = scmp.ne.s32.totalorder %s273, %s275
      %p282 = scmp.eq.s32.totalorder %s27, 1
      %p283 = por %p281, %p282
      %p284 = scmp.ne.s32.totalorder %s275, %s276
      %p285 = scmp.eq.s32.totalorder %s27, 0
      %p286 = por %p284, %p285
      %p287 = scmp.ne.s32.totalorder %s275, %s276
      %p288 = scmp.eq.s32.totalorder %s28, 1
      %p289 = por %p287, %p288
      %p291 = scmp.ne.s32.totalorder %s276, %s290
      %p292 = scmp.eq.s32.totalorder %s28, 0
      %p293 = por %p291, %p292
      %s295 = sadd.s32 %s294, 1
      %p298 = scmp.eq.s32.totalorder %s22, 1
      %p299 = scmp.ne.s32.totalorder %s294, %s296
      %p300 = scmp.eq.s32.totalorder %s22, 0
      %p301 = por %p299, %p300
      %p302 = scmp.ne.s32.totalorder %s294, %s296
      %p303 = scmp.eq.s32.totalorder %s27, 1
      %p304 = por %p302, %p303
      %p305 = scmp.ne.s32.totalorder %s296, %s297
      %p306 = scmp.eq.s32.totalorder %s27, 0
      %p307 = por %p305, %p306
      %p308 = scmp.ne.s32.totalorder %s296, %s297
      %p309 = scmp.eq.s32.totalorder %s28, 1
      %p310 = por %p308, %p309
      %p312 = scmp.ne.s32.totalorder %s297, %s311
      %p313 = scmp.eq.s32.totalorder %s28, 0
      %p314 = por %p312, %p313
      %s316 = sadd.s32 %s315, 1
      %p319 = scmp.eq.s32.totalorder %s22, 1
      %p320 = scmp.ne.s32.totalorder %s315, %s317
      %p321 = scmp.eq.s32.totalorder %s22, 0
      %p322 = por %p320, %p321
      %p323 = scmp.ne.s32.totalorder %s315, %s317
      %p324 = scmp.eq.s32.totalorder %s27, 1
      %p325 = por %p323, %p324
      %p326 = scmp.ne.s32.totalorder %s317, %s318
      %p327 = scmp.eq.s32.totalorder %s27, 0
      %p328 = por %p326, %p327
      %p329 = scmp.ne.s32.totalorder %s317, %s318
      %p330 = scmp.eq.s32.totalorder %s28, 1
      %p331 = por %p329, %p330
      %p333 = scmp.ne.s32.totalorder %s318, %s332
      %p334 = scmp.eq.s32.totalorder %s28, 0
      %p335 = por %p333, %p334
      %s336 = ssub.s32 %s29, %s41
      %s337 = ssub.s32 %s30, %s37
      %s338 = sor.u32 %s336, %s337
      %p339 = scmp.eq.s32.totalorder %s338, 0
      %s341 = sadd.s32 %s340, 1
      %s342 = scalar_select %p339, %s340, %s341
      %p345 = pneg %p339
      %p346 = scmp.eq.s32.totalorder %s22, 1
      %p347 = por %p345, %p346
      %p348 = scmp.ne.s32.totalorder %s340, %s343
      %p349 = scmp.eq.s32.totalorder %s22, 0
      %p350 = por %p348, %p349
      %p351 = scmp.ne.s32.totalorder %s340, %s343
      %p352 = scmp.eq.s32.totalorder %s27, 1
      %p353 = por %p351, %p352
      %p354 = scmp.ne.s32.totalorder %s343, %s344
      %p355 = scmp.eq.s32.totalorder %s27, 0
      %p356 = por %p354, %p355
      %p357 = scmp.ne.s32.totalorder %s343, %s344
      %p358 = scmp.eq.s32.totalorder %s28, 1
      %p359 = por %p357, %p358
      %p361 = scmp.ne.s32.totalorder %s344, %s360
      %p362 = scmp.eq.s32.totalorder %s28, 0
      %p363 = por %p361, %p362
      %p364 = scmp.le.s32.totalorder 1, %s22
      %p365 = scmp.lt.s32.totalorder %s22, 3
      %p366 = pnand %p364, %p365
      %p367 = pneg %p366
      // Predicated region
      $region9: #{tpu_custom_call.1} parent=5 // pred_check
        _
      $region10: #{tpu_custom_call.1} parent=5 // pred_check_branch
        %369 = sbr.rel (%p366) target = $region12
      $region11: #{tpu_custom_call.1} parent=5 // pred_region
        %s370 = ssub.s32 %s22, 1
        // Predicated region
        $region13: #{tpu_custom_call.1} parent=11 // pred_check
          %p371 = pneg %p139
        $region14: #{tpu_custom_call.1} parent=11 // pred_check_branch
          %373 = sbr.rel (%p371) target = $region16
        $region15: #{tpu_custom_call.1} parent=11 // pred_region
          _
        $region16: #{tpu_custom_call.1} parent=11 // pred_fallthru
          _
        // Predicated region
        $region17: #{tpu_custom_call.1} parent=11 // pred_check
          %p374 = pneg %p160
        $region18: #{tpu_custom_call.1} parent=11 // pred_check_branch
          %376 = sbr.rel (%p374) target = $region20
        $region19: #{tpu_custom_call.1} parent=11 // pred_region
          _
        $region20: #{tpu_custom_call.1} parent=11 // pred_fallthru
          _
        // Predicated region
        $region21: #{tpu_custom_call.1} parent=11 // pred_check
          %p377 = pneg %p181
        $region22: #{tpu_custom_call.1} parent=11 // pred_check_branch
          %379 = sbr.rel (%p377) target = $region24
        $region23: #{tpu_custom_call.1} parent=11 // pred_region
          _
        $region24: #{tpu_custom_call.1} parent=11 // pred_fallthru
          _
        // Predicated region
        $region25: #{tpu_custom_call.1} parent=11 // pred_check
          %p380 = pneg %p202
        $region26: #{tpu_custom_call.1} parent=11 // pred_check_branch
          %382 = sbr.rel (%p380) target = $region28
        $region27: #{tpu_custom_call.1} parent=11 // pred_region
          _
        $region28: #{tpu_custom_call.1} parent=11 // pred_fallthru
          _
        // Predicated region
        $region29: #{tpu_custom_call.1} parent=11 // pred_check
          %p383 = pneg %p223
        $region30: #{tpu_custom_call.1} parent=11 // pred_check_branch
          %385 = sbr.rel (%p383) target = $region32
        $region31: #{tpu_custom_call.1} parent=11 // pred_region
          _
        $region32: #{tpu_custom_call.1} parent=11 // pred_fallthru
          _
        // Predicated region
        $region33: #{tpu_custom_call.1} parent=11 // pred_check
          %p386 = pneg %p244
        $region34: #{tpu_custom_call.1} parent=11 // pred_check_branch
          %388 = sbr.rel (%p386) target = $region36
        $region35: #{tpu_custom_call.1} parent=11 // pred_region
          _
        $region36: #{tpu_custom_call.1} parent=11 // pred_fallthru
          _
        // Predicated region
        $region37: #{tpu_custom_call.1} parent=11 // pred_check
          %p389 = pneg %p265
        $region38: #{tpu_custom_call.1} parent=11 // pred_check_branch
          %391 = sbr.rel (%p389) target = $region40
        $region39: #{tpu_custom_call.1} parent=11 // pred_region
          _
        $region40: #{tpu_custom_call.1} parent=11 // pred_fallthru
          _
        // Predicated region
        $region41: #{tpu_custom_call.1} parent=11 // pred_check
          %p392 = pneg %p286
        $region42: #{tpu_custom_call.1} parent=11 // pred_check_branch
          %394 = sbr.rel (%p392) target = $region44
        $region43: #{tpu_custom_call.1} parent=11 // pred_region
          _
        $region44: #{tpu_custom_call.1} parent=11 // pred_fallthru
          _
        // Predicated region
        $region45: #{tpu_custom_call.1} parent=11 // pred_check
          %p395 = pneg %p307
        $region46: #{tpu_custom_call.1} parent=11 // pred_check_branch
          %397 = sbr.rel (%p395) target = $region48
        $region47: #{tpu_custom_call.1} parent=11 // pred_region
          _
        $region48: #{tpu_custom_call.1} parent=11 // pred_fallthru
          _
        // Predicated region
        $region49: #{tpu_custom_call.1} parent=11 // pred_check
          %p398 = pneg %p328
        $region50: #{tpu_custom_call.1} parent=11 // pred_check_branch
          %400 = sbr.rel (%p398) target = $region52
        $region51: #{tpu_custom_call.1} parent=11 // pred_region
          _
        $region52: #{tpu_custom_call.1} parent=11 // pred_fallthru
          _
      $region12: #{tpu_custom_call.1} parent=5 // pred_fallthru
        _
      %p401 = scmp.lt.s32.totalorder %s22, 2
      // Predicated region
      $region53: #{tpu_custom_call.1} parent=5 // pred_check
        %p402 = pneg %p401
      $region54: #{tpu_custom_call.1} parent=5 // pred_check_branch
        %404 = sbr.rel (%p402) target = $region56
      $region55: #{tpu_custom_call.1} parent=5 // pred_region
        // Predicated region
        $region57: #{tpu_custom_call.1} parent=55 // pred_check
          %p405 = pneg %p56
        $region58: #{tpu_custom_call.1} parent=55 // pred_check_branch
          %407 = sbr.rel (%p405) target = $region60
        $region59: #{tpu_custom_call.1} parent=55 // pred_region
          %s408 = smul.u32 2, %s30
          %p409 = scmp.lt.s32.totalorder %s29, 1
          %s410 = scalar_select %p409, %s29, 1
          %p411 = scmp.lt.s32.totalorder %s408, 1
          %s412 = scalar_select %p411, %s408, 1
          %s413 = smul.addr %s410, 2
          %s414 = sadd.s32 %s412, %s413
          %s415 = smul.addr %s414, 4
          %s416 = scalar_lea.vmem %s0, %s415
          %s417 = smul.u32 2, %s30
        $region60: #{tpu_custom_call.1} parent=55 // pred_fallthru
          _
        // Predicated region
        $region61: #{tpu_custom_call.1} parent=55 // pred_check
          %p418 = pneg %p84
        $region62: #{tpu_custom_call.1} parent=55 // pred_check_branch
          %420 = sbr.rel (%p418) target = $region64
        $region63: #{tpu_custom_call.1} parent=55 // pred_region
          %s421 = smul.u32 2, %s30
          %p422 = scmp.lt.s32.totalorder %s29, 1
          %s423 = scalar_select %p422, %s29, 1
          %p424 = scmp.lt.s32.totalorder %s421, 1
          %s425 = scalar_select %p424, %s421, 1
          %s426 = smul.addr %s423, 2
          %s427 = sadd.s32 %s425, %s426
          %s428 = smul.addr %s427, 4
          %s429 = scalar_lea.vmem %s1, %s428
          %s430 = smul.u32 2, %s30
        $region64: #{tpu_custom_call.1} parent=55 // pred_fallthru
          _
        // Predicated region
        $region65: #{tpu_custom_call.1} parent=55 // pred_check
          %p431 = pneg %p112
        $region66: #{tpu_custom_call.1} parent=55 // pred_check_branch
          %433 = sbr.rel (%p431) target = $region68
        $region67: #{tpu_custom_call.1} parent=55 // pred_region
          %s434 = smul.u32 2, %s30
          %p435 = scmp.lt.s32.totalorder %s29, 1
          %s436 = scalar_select %p435, %s29, 1
          %p437 = scmp.lt.s32.totalorder %s434, 1
          %s438 = scalar_select %p437, %s434, 1
          %s439 = smul.addr %s436, 2
          %s440 = sadd.s32 %s438, %s439
          %s441 = smul.addr %s440, 4
          %s442 = scalar_lea.vmem %s2, %s441
          %s443 = smul.u32 2, %s30
        $region68: #{tpu_custom_call.1} parent=55 // pred_fallthru
          _
      $region56: #{tpu_custom_call.1} parent=5 // pred_fallthru
        _
      %p444 = scmp.le.s32.totalorder 1, %s22
      %p445 = scmp.lt.s32.totalorder %s22, 3
      %p446 = pnand %p444, %p445
      %p447 = pneg %p446
      // Predicated region
      $region69: #{tpu_custom_call.1} parent=5 // pred_check
        _
      $region70: #{tpu_custom_call.1} parent=5 // pred_check_branch
        %449 = sbr.rel (%p446) target = $region72
      $region71: #{tpu_custom_call.1} parent=5 // pred_region
        %s450 = ssub.s32 %s22, 1
        %s451 = smul.u32 2, %s32
        %p452 = scmp.lt.s32.totalorder %s31, 1
        %s453 = scalar_select %p452, %s31, 1
        %p454 = scmp.lt.s32.totalorder %s451, 1
        %s455 = scalar_select %p454, %s451, 1
        %s456 = smul.addr %s453, 2
        %s457 = sadd.s32 %s455, %s456
        %s458 = smul.addr %s457, 4
        %s459 = scalar_lea.vmem %s0, %s458
        %p460 = pneg %p62
        %p461 = pneg %p59
        %s462 = smul.u32 2, %s32
        %p463 = scmp.lt.s32.totalorder %s31, 1
        %s464 = scalar_select %p463, %s31, 1
        %p465 = scmp.lt.s32.totalorder %s462, 1
        %s466 = scalar_select %p465, %s462, 1
        %s467 = smul.addr %s464, 2
        %s468 = sadd.s32 %s466, %s467
        %s469 = smul.addr %s468, 4
        %s470 = scalar_lea.vmem %s1, %s469
        %p471 = pneg %p90
        %p472 = pneg %p87
        %s473 = smul.u32 2, %s32
        %p474 = scmp.lt.s32.totalorder %s31, 1
        %s475 = scalar_select %p474, %s31, 1
        %p476 = scmp.lt.s32.totalorder %s473, 1
        %s477 = scalar_select %p476, %s473, 1
        %s478 = smul.addr %s475, 2
        %s479 = sadd.s32 %s477, %s478
        %s480 = smul.addr %s479, 4
        %s481 = scalar_lea.vmem %s2, %s480
        %p482 = pneg %p118
        %p483 = pneg %p115
        %p484 = pneg %p139
        %p485 = pneg %p136
        %p486 = pneg %p160
        %p487 = pneg %p157
        %p488 = pneg %p181
        %p489 = pneg %p178
        %p490 = pneg %p202
        %p491 = pneg %p199
        %p492 = pneg %p223
        %p493 = pneg %p220
        %p494 = pneg %p244
        %p495 = pneg %p241
        %p496 = pneg %p265
        %p497 = pneg %p262
        %p498 = pneg %p286
        %p499 = pneg %p283
        %p500 = pneg %p307
        %p501 = pneg %p304
        %p502 = pneg %p328
        %p503 = pneg %p325
        %p504 = pneg %p356
        %p505 = pneg %p353
        %s506 = sand.u32 %s343, 1
        %s507 = scalar_lea.sflag [#allocation3], %s506
        %s508 = sand.u32 %s343, 1
        %s509 = smul.addr %s508, 16
        %s510 = scalar_lea.vmem [#allocation2], %s509
        %s511 = smul.u32 2, %s32
        %p512 = scmp.lt.s32.totalorder %s31, 1
        %s513 = scalar_select %p512, %s31, 1
        %p514 = scmp.lt.s32.totalorder %s511, 1
        %s515 = scalar_select %p514, %s511, 1
        %s516 = smul.addr %s513, 2
        %s517 = sadd.s32 %s515, %s516
        %s518 = smul.addr %s517, 4
        %s519 = scalar_lea.vmem %s0, %s518
        %s520 = smul.u32 2, %s32
        %s521 = smul.u32 2, %s32
        %p522 = scmp.lt.s32.totalorder %s31, 1
        %s523 = scalar_select %p522, %s31, 1
        %p524 = scmp.lt.s32.totalorder %s521, 1
        %s525 = scalar_select %p524, %s521, 1
        %s526 = smul.addr %s523, 2
        %s527 = sadd.s32 %s525, %s526
        %s528 = smul.addr %s527, 4
        %s529 = scalar_lea.vmem %s1, %s528
        %s530 = smul.u32 2, %s32
        %s531 = smul.u32 2, %s32
        %p532 = scmp.lt.s32.totalorder %s31, 1
        %s533 = scalar_select %p532, %s31, 1
        %p534 = scmp.lt.s32.totalorder %s531, 1
        %s535 = scalar_select %p534, %s531, 1
        %s536 = smul.addr %s533, 2
        %s537 = sadd.s32 %s535, %s536
        %s538 = smul.addr %s537, 4
        %s539 = scalar_lea.vmem %s2, %s538
        %s540 = smul.u32 2, %s32
        %s541 = smul.u32 2, %s32
        %v543 = vld [vmem:[%s519] sm:$0xff]
        %v544 = vld [vmem:[%s529] sm:$0xff]
        %v545 = vld [vmem:[%s539] sm:$0xff]
        %v546 = vsub.f32 0.0, %v545
        %v547 = vmul.f32 %v546, 1.442695
        %v548 = vpow.pop %v547
        %v549 = vadd.f32 %v548, 1.0
        %v550 = vrcp.pop %v549
        %v551 = vmul.f32 1.0, %v550
        %v552 = vsub.f32 1.0, %v551
        %v553 = vmul.f32 %v552, %v544
        %v554 = vadd.f32 %v553, %v543
        %v555 = vmul.f32 %v551, %v543
        %v556 = vadd.f32 %v544, %v555
        %v557 = vld [vmem:[%s3] sm:$0xf]
        %559 = vset.pattern.permute.xlu0 0
        %560 = vperm.xlu0 %559, %v557
        %v561 = vpop.permute.xlu0 %560
        %v563 = vunpack.c.l.s4 839922192
        %v564 = vunpack.c.0.s8 %v563
        %v565 = vlaneseq
        %v566 = vshrl.u32 %v565, 7
        %v567 = vsub.s32 %v564, %v566
        %v568 = vrot.slane %v561, %v567
        %v570 = vmul.f32 %v554, %v568
        %v571 = vld [vmem:[%s4] sm:$0xf]
        %573 = vset.pattern.permute.xlu0 0
        %574 = vperm.xlu0 %573, %v571
        %v575 = vpop.permute.xlu0 %574
        %v577 = vunpack.c.l.s4 839922192
        %v578 = vunpack.c.0.s8 %v577
        %v579 = vlaneseq
        %v580 = vshrl.u32 %v579, 7
        %v581 = vsub.s32 %v578, %v580
        %v582 = vrot.slane %v575, %v581
        %v584 = vadd.f32 %v570, %v582
        %v585 = vmax.f32 %v584, 0.0
        %v586 = vld [vmem:[%s8] sm:$0xf]
        %588 = vset.pattern.permute.xlu0 0
        %589 = vperm.xlu0 %588, %v586
        %v590 = vpop.permute.xlu0 %589
        %v592 = vunpack.c.l.s4 839922192
        %v593 = vunpack.c.0.s8 %v592
        %v594 = vlaneseq
        %v595 = vshrl.u32 %v594, 7
        %v596 = vsub.s32 %v593, %v595
        %v597 = vrot.slane %v590, %v596
        %v599 = vmul.f32 %v556, %v597
        %v600 = vld [vmem:[%s9] sm:$0xf]
        %602 = vset.pattern.permute.xlu0 0
        %603 = vperm.xlu0 %602, %v600
        %v604 = vpop.permute.xlu0 %603
        %v606 = vunpack.c.l.s4 839922192
        %v607 = vunpack.c.0.s8 %v606
        %v608 = vlaneseq
        %v609 = vshrl.u32 %v608, 7
        %v610 = vsub.s32 %v607, %v609
        %v611 = vrot.slane %v604, %v610
        %v613 = vadd.f32 %v599, %v611
        %v614 = vmax.f32 %v613, 0.0
        %v615 = vld [vmem:[%s5] sm:$0xff]
        %v616 = vpack.c.bf16 %v615, %v615
        %v618 = vcombine.high %v585, %v585
        %v620 = vpack.c.bf16 %v585, %v585
        %v621 = vpack.c.bf16 %v618, %v618
        %vm622 = vcmask 31744
        %v624 = vsel %vm622, %v616, 0
        %vm626 = vcmask 1041408
        %v628 = vsel %vm626, %v620, 0
        %v631 = vsel %vm626, %v621, 0
        %633 = vmatprep.subr.bf16.mxu0 0
        %634 = vmatpush1.bf16.msra.mxu0 0
        %635 = vmatprep.subr.bf16.mxu0 0
        %636 = vmatpush1.bf16.msra.mxu0 0
        %637 = vmatprep.subr.bf16.mxu0 0
        %638 = vmatpush1.bf16.msra.mxu0 0
        %639 = vmatprep.subr.bf16.mxu0 0
        %640 = vmatpush1.bf16.msra.mxu0 0
        %641 = vmatprep.subr.bf16.mxu0 0
        %642 = vmatpush1.bf16.msra.mxu0 0
        %643 = vmatprep.subr.bf16.mxu0 0
        %644 = vmatpush1.bf16.msra.mxu0 0
        %645 = vmatprep.subr.bf16.mxu0 0
        %646 = vmatpush1.bf16.msra.mxu0 0
        %647 = vmatprep.subr.bf16.mxu0 %v631
        %648 = vmatpush1.bf16.msra.mxu0 %v628
        %649 = vmatprep.subr.bf16.mxu0 0
        %650 = vmatpush2.bf16.msra.mxu0 0
        %651 = vmatprep.subr.bf16.mxu0 0
        %652 = vmatpush2.bf16.msra.mxu0 0
        %653 = vmatprep.subr.bf16.mxu0 0
        %654 = vmatpush2.bf16.msra.mxu0 0
        %655 = vmatprep.subr.bf16.mxu0 0
        %656 = vmatpush2.bf16.msra.mxu0 0
        %657 = vmatprep.subr.bf16.mxu0 0
        %658 = vmatpush2.bf16.msra.mxu0 0
        %659 = vmatprep.subr.bf16.mxu0 0
        %660 = vmatpush2.bf16.msra.mxu0 0
        %661 = vmatprep.subr.bf16.mxu0 0
        %662 = vmatpush2.bf16.msra.mxu0 0
        %663 = vmatprep.subr.bf16.mxu0 0
        %664 = vmatpush2.bf16.msra.mxu0 0
        %665 = vmatprep.mubr.bf16.mxu0 0
        %666 = vmatmul.mubr.bf16.gmra.mxu0 %v624
        %v667 = vpop.f32.mrf.mxu0
        %v668 = vadd.f32 0.0, %v667
        %v669 = vpop.f32.mrf.mxu0
        %v670 = vadd.f32 0.0, %v669
        %v671 = vpop.f32.mrf.mxu0
        %v672 = vpop.f32.mrf.mxu0
        %673 = vdwg.mxu0
        %v674 = vld [vmem:[%s10] sm:$0xff]
        %v675 = vpack.c.bf16 %v674, %v674
        %v677 = vcombine.high %v614, %v614
        %v679 = vpack.c.bf16 %v614, %v614
        %v680 = vpack.c.bf16 %v677, %v677
        %v682 = vsel %vm622, %v675, 0
        %v685 = vsel %vm626, %v679, 0
        %v688 = vsel %vm626, %v680, 0
        %690 = vmatprep.subr.bf16.mxu0 0
        %691 = vmatpush1.bf16.msra.mxu0 0
        %692 = vmatprep.subr.bf16.mxu0 0
        %693 = vmatpush1.bf16.msra.mxu0 0
        %694 = vmatprep.subr.bf16.mxu0 0
        %695 = vmatpush1.bf16.msra.mxu0 0
        %696 = vmatprep.subr.bf16.mxu0 0
        %697 = vmatpush1.bf16.msra.mxu0 0
        %698 = vmatprep.subr.bf16.mxu0 0
        %699 = vmatpush1.bf16.msra.mxu0 0
        %700 = vmatprep.subr.bf16.mxu0 0
        %701 = vmatpush1.bf16.msra.mxu0 0
        %702 = vmatprep.subr.bf16.mxu0 0
        %703 = vmatpush1.bf16.msra.mxu0 0
        %704 = vmatprep.subr.bf16.mxu0 %v688
        %705 = vmatpush1.bf16.msra.mxu0 %v685
        %706 = vmatprep.subr.bf16.mxu0 0
        %707 = vmatpush2.bf16.msra.mxu0 0
        %708 = vmatprep.subr.bf16.mxu0 0
        %709 = vmatpush2.bf16.msra.mxu0 0
        %710 = vmatprep.subr.bf16.mxu0 0
        %711 = vmatpush2.bf16.msra.mxu0 0
        %712 = vmatprep.subr.bf16.mxu0 0
        %713 = vmatpush2.bf16.msra.mxu0 0
        %714 = vmatprep.subr.bf16.mxu0 0
        %715 = vmatpush2.bf16.msra.mxu0 0
        %716 = vmatprep.subr.bf16.mxu0 0
        %717 = vmatpush2.bf16.msra.mxu0 0
        %718 = vmatprep.subr.bf16.mxu0 0
        %719 = vmatpush2.bf16.msra.mxu0 0
        %720 = vmatprep.subr.bf16.mxu0 0
        %721 = vmatpush2.bf16.msra.mxu0 0
        %722 = vmatprep.mubr.bf16.mxu0 0
        %723 = vmatmul.mubr.bf16.gmra.mxu0 %v682
        %v724 = vpop.f32.mrf.mxu0
        %v725 = vadd.f32 0.0, %v724
        %v726 = vpop.f32.mrf.mxu0
        %v727 = vadd.f32 0.0, %v726
        %v728 = vpop.f32.mrf.mxu0
        %v729 = vpop.f32.mrf.mxu0
        %730 = vdwg.mxu0
        %v731 = vld [vmem:[%s6] sm:$0xff]
        %733 = vset.pattern.permute.xlu0 0
        %734 = vperm.xlu0 %733, %v731
        %v735 = vpop.permute.xlu0 %734
        %v737 = vmul.f32 %v668, %v735
        %v738 = vmul.f32 %v670, %v735
        %v739 = vld [vmem:[%s7] sm:$0xff]
        %741 = vset.pattern.permute.xlu0 0
        %742 = vperm.xlu0 %741, %v739
        %v743 = vpop.permute.xlu0 %742
        %v745 = vadd.f32 %v737, %v743
        %v746 = vadd.f32 %v738, %v743
        %v747 = vld [vmem:[%s11] sm:$0xff]
        %749 = vset.pattern.permute.xlu0 0
        %750 = vperm.xlu0 %749, %v747
        %v751 = vpop.permute.xlu0 %750
        %v753 = vmul.f32 %v725, %v751
        %v754 = vmul.f32 %v727, %v751
        %v755 = vld [vmem:[%s12] sm:$0xff]
        %757 = vset.pattern.permute.xlu0 0
        %758 = vperm.xlu0 %757, %v755
        %v759 = vpop.permute.xlu0 %758
        %v761 = vadd.f32 %v753, %v759
        %v762 = vadd.f32 %v754, %v759
        %v763 = vadd.f32 %v745, %v761
        %v764 = vadd.f32 %v746, %v762
        %765 = vst [vmem:[%s510] sm:$0xff] %v763
        %766 = vst [vmem:[%s510 + $0x8] sm:$0xff] %v764
        %s767 = sand.u32 %s343, 1
        %s768 = scalar_lea.sflag [#allocation3], %s767
        %s769 = sand.u32 %s343, 1
        %s770 = smul.addr %s769, 16
        %s771 = scalar_lea.vmem [#allocation2], %s770
        // Predicated region
        $region73: #{tpu_custom_call.1} parent=71 // pred_check
          %p772 = pneg %p353
        $region74: #{tpu_custom_call.1} parent=71 // pred_check_branch
          %774 = sbr.rel (%p772) target = $region76
        $region75: #{tpu_custom_call.1} parent=71 // pred_region
          %s775 = smul.u32 2, %s32
          %s777 = ssub.s32 256, 256
          %778 = vsyncadd %s768, %s777
          %s779 = smul.addr %s31, 2
          %s780 = sadd.s32 %s775, %s779
          %s781 = smul.addr %s780, 128
          %s782 = scalar_lea.hbm %s13, %s781
          %s784 = sshll.u32 %s771, 4
          %s785 = int_to_ptr.vmem [resolvable:$true] %s784
          %787 = dma.vmem_to_hbm [thread:$0]  %s785, 256, %s782, %s768
        $region76: #{tpu_custom_call.1} parent=71 // pred_fallthru
          _
      $region72: #{tpu_custom_call.1} parent=5 // pred_fallthru
        _
      %p788 = scmp.le.s32.totalorder 2, %s22
      // Predicated region
      $region77: #{tpu_custom_call.1} parent=5 // pred_check
        %p789 = pneg %p788
      $region78: #{tpu_custom_call.1} parent=5 // pred_check_branch
        %791 = sbr.rel (%p789) target = $region80
      $region79: #{tpu_custom_call.1} parent=5 // pred_region
        %s792 = ssub.s32 %s22, 2
        // Predicated region
        $region81: #{tpu_custom_call.1} parent=79 // pred_check
          %p793 = pneg %p359
        $region82: #{tpu_custom_call.1} parent=79 // pred_check_branch
          %795 = sbr.rel (%p793) target = $region84
        $region83: #{tpu_custom_call.1} parent=79 // pred_region
          %s796 = sand.u32 %s344, 1
          %s797 = scalar_lea.sflag [#allocation3], %s796
          %s798 = sand.u32 %s344, 1
          %s799 = smul.addr %s798, 16
          %s800 = scalar_lea.vmem [#allocation2], %s799
          %801 = dma.done %s797, 256
        $region84: #{tpu_custom_call.1} parent=79 // pred_fallthru
          _
      $region80: #{tpu_custom_call.1} parent=5 // pred_fallthru
        _
    $region6: #{tpu_custom_call.1} parent=1 // loop_footer
      %s26 = sadd.s32 1, %s22
    $region7: #{tpu_custom_call.1} parent=1 // loop_footer_branch
      %21 = sbr.rel target = $region3
    $region8: #{tpu_custom_call.1} parent=1 // loop_exit
      _
    %802 = vsyncpa [#allocation3], 1
    %s803 = scalar_lea.sflag [#allocation3], 1
    %804 = vsyncpa %s803, 1

</llo_original>
